<compile_context>
chip_gen: v7x
topology: tpu7x:2x2x1
jax: 0.10.0
libtpu: 0.0.40
codegen_flags: <defaults>
</compile_context>

<pallas_src>
import jax
import jax.numpy as jnp
from jax import lax
from jax.experimental import pallas as pl
from jax.experimental.pallas import tpu as pltpu


def _round_up(x, m):
    return (x + m - 1) // m * m


# ------------------------------ JAX wrapper ----------------------------------
def mini_pointnet_forward(x_bcn, padded_params, output_size, *, tile_b=8, tile_n=128):
    """x_bcn: (B, C_in, N) like the PyTorch module. Returns (B, output_size)."""
    w1, b1, w2, b2, w3, b3, w4, b4 = padded_params
    B, C_in, N = x_bcn.shape
    C1P, C2P, HP, OUTP = w1.shape[1], w2.shape[1], w3.shape[1], w4.shape[1]
    assert w1.shape[0] == C_in

    # (B, C, N) -> (B, N, C) channels-last so every 1x1 conv is a lane matmul;
    # cast to bf16 to halve x's HBM traffic (f32 accumulation in the kernel).
    # TODO(synk): have upstream produce (B, N, C) directly to avoid this extra
    # HBM round trip on x.
    x = jnp.transpose(x_bcn, (0, 2, 1)).astype(jnp.bfloat16)

    # Tile sizes.  N (the pooled/reduction axis) is tiled and placed last in
    # the grid; the point tile must be a multiple of 8 (sublane rule).
    tn = min(tile_n, _round_up(N, 8))
    n_pad = _round_up(N, tn)
    if B <= tile_b:
        tb = B                                   # single B tile, full extent
    else:
        tb = _round_up(tile_b, 8)                # out block (tb, OUTP) needs tb % 8 == 0
    b_pad = _round_up(B, tb)
    if (b_pad, n_pad) != (B, N):
        x = jnp.pad(x, ((0, b_pad - B), (0, n_pad - N), (0, 0)))

    grid = (b_pad // tb, n_pad // tn)
    mask_tail = n_pad != N

    def kernel(x_ref, w1_ref, b1_ref, w2_ref, b2_ref, w3_ref, b3_ref,
               w4_ref, b4_ref, out_ref, pool_ref):
        kn = pl.program_id(1)

        @pl.when(kn == 0)
        def _init():
            # ReLU outputs are >= 0, so 0 is the identity for the running max.
            pool_ref[...] = jnp.zeros_like(pool_ref)

        xt = x_ref[...].astype(jnp.float32)            # (tb, tn, C_in)

        # Layer 1: Conv1d(k=1)+BN(folded)+ReLU.  K = C_in is tiny, so unroll
        # it as C_in VPU broadcast-FMAs (f32) instead of an MXU matmul.
        h = jnp.zeros((tb, tn, C1P), jnp.float32)
        for c in range(C_in):                          # static unroll
            h = h + xt[:, :, c:c + 1] * w1_ref[c, :]
        h = jnp.maximum(h + b1_ref[...], 0.0)          # (tb, tn, C1P)

        # Layer 2: single long-M MXU matmul over the flattened rows,
        # bf16 inputs, f32 accumulation.
        h2 = jnp.dot(h.reshape(tb * tn, C1P).astype(jnp.bfloat16), w2_ref[...],
                     preferred_element_type=jnp.float32)
        h2 = jnp.maximum(h2 + b2_ref[...], 0.0).reshape(tb, tn, C2P)

        if mask_tail:
            # zero out padded tail points so ReLU(bias) of pad rows cannot
            # leak into the global max (0 is the max identity here).
            pid = kn * tn + lax.broadcasted_iota(jnp.int32, (tb, tn, C2P), 1)
            h2 = jnp.where(pid < N, h2, 0.0)

        # Running AdaptiveMaxPool1d(1) over the point axis.
        pool_ref[...] = jnp.maximum(pool_ref[...], jnp.max(h2, axis=1))

        # Head (Linear+BN+ReLU, final fc): tiny, run once per B-tile.
        @pl.when(kn == pl.num_programs(1) - 1)
        def _head():
            g = jnp.dot(pool_ref[...], w3_ref[...],
                        preferred_element_type=jnp.float32)
            g = jnp.maximum(g + b3_ref[...], 0.0)
            out_ref[...] = (jnp.dot(g, w4_ref[...],
                                    preferred_element_type=jnp.float32)
                            + b4_ref[...])

    def resident(arr):
        # full-shape block + constant index_map -> stays resident in VMEM,
        # no re-DMA per grid step.
        return pl.BlockSpec(arr.shape, lambda ib, kn: (0, 0))

    out = pl.pallas_call(
        kernel,
        out_shape=jax.ShapeDtypeStruct((b_pad, OUTP), jnp.float32),
        grid_spec=pltpu.PrefetchScalarGridSpec(
            num_scalar_prefetch=0,
            grid=grid,
            in_specs=[pl.BlockSpec((tb, tn, C_in), lambda ib, kn: (ib, kn, 0)),
                      resident(w1), resident(b1),
                      resident(w2), resident(b2),
                      resident(w3), resident(b3),
                      resident(w4), resident(b4)],
            out_specs=pl.BlockSpec((tb, OUTP), lambda ib, kn: (ib, 0)),
            scratch_shapes=[pltpu.VMEM((tb, C2P), jnp.float32)]),
        compiler_params=pltpu.CompilerParams(
            dimension_semantics=("parallel", "arbitrary"),
            vmem_limit_bytes=48 * 1024 * 1024),
    )(x, w1, b1, w2, b2, w3, b3, w4, b4)

    return out[:B, :output_size]


# ------------------------- deterministic parameters --------------------------
def _fold_bn(W, b, gamma, beta, mean, var, eps=1e-5):
    """Fold eval-mode BatchNorm1d into a preceding (in,out) weight + (out,) bias."""
    scale = gamma / jnp.sqrt(var + eps)
    return W * scale[None, :], (b - mean) * scale + beta


def _make_bn_layer(key, c_in, c_out):
    k_w, k_b, k_g, k_be, k_m, k_v = jax.random.split(key, 6)
    W = jax.random.normal(k_w, (c_in, c_out), jnp.float32) * 0.2
    b = jax.random.normal(k_b, (c_out,), jnp.float32) * 0.1
    gamma = jax.random.uniform(k_g, (c_out,), jnp.float32, 0.8, 1.2)
    beta = jax.random.normal(k_be, (c_out,), jnp.float32) * 0.1
    mean = jax.random.normal(k_m, (c_out,), jnp.float32) * 0.1
    var = jax.random.uniform(k_v, (c_out,), jnp.float32, 0.5, 1.5)
    return _fold_bn(W, b, gamma, beta, mean, var)


def make_params(key, input_channel, per_point_mlp, hidden_mlp, output_size):
    """Unpadded folded params: [w1, b1, w2, b2, w3, b3, w4, b4] (weights (in,out))."""
    keys = jax.random.split(key, len(per_point_mlp) + len(hidden_mlp) + 1)
    params, c, i = [], input_channel, 0
    for c_out in per_point_mlp:            # Conv1d(c, c_out, 1) + BN + ReLU
        W, b = _make_bn_layer(keys[i], c, c_out)
        params += [W, b]
        c, i = c_out, i + 1
    for c_out in hidden_mlp:               # Linear(c, c_out) + BN + ReLU
        W, b = _make_bn_layer(keys[i], c, c_out)
        params += [W, b]
        c, i = c_out, i + 1
    k_w, k_b = jax.random.split(keys[i])   # final fc (no BN)
    W = jax.random.normal(k_w, (c, output_size), jnp.float32) * 0.2
    b = jax.random.normal(k_b, (output_size,), jnp.float32) * 0.1
    params += [W, b]
    return params


def pad_params(params, lane=128):
    """Zero-pad channel dims to the 128-lane width; cast the big per-point
    matmul weight to bf16.  Zero pads are exact no-ops through ReLU/max/matmul."""
    w1, b1, w2, b2, w3, b3, w4, b4 = params

    def padw(w, rows, dtype=jnp.float32):
        cols = _round_up(w.shape[1], lane)
        out = jnp.zeros((rows, cols), jnp.float32).at[:w.shape[0], :w.shape[1]].set(w)
        return out.astype(dtype)

    def padb(b):
        cols = _round_up(b.shape[0], lane)
        return jnp.zeros((1, cols), jnp.float32).at[0, :b.shape[0]].set(b)

    c_in = w1.shape[0]
    c1p = _round_up(w1.shape[1], lane)
    c2p = _round_up(w2.shape[1], lane)
    hp = _round_up(w3.shape[1], lane)
    return [padw(w1, c_in), padb(b1),
            padw(w2, c1p, jnp.bfloat16), padb(b2),
            padw(w3, c2p), padb(b3),
            padw(w4, hp), padb(b4)]


# ---------------------------- pure-JAX reference ------------------------------
def reference_forward(x_bcn, params):
    """Pure-JAX reference with the same dtype decisions as the kernel
    (x and the layer-2 matmul in bf16, f32 accumulation everywhere)."""
    w1, b1, w2, b2, w3, b3, w4, b4 = params
    x = jnp.transpose(x_bcn, (0, 2, 1)).astype(jnp.bfloat16)       # (B, N, C)
    B, N, C = x.shape
    h = jnp.zeros((B, N, w1.shape[1]), jnp.float32)
    for c in range(C):
        h = h + x[:, :, c:c + 1].astype(jnp.float32) * w1[c]
    h = jnp.maximum(h + b1, 0.0)
    h2 = jnp.dot(h.reshape(B * N, -1).astype(jnp.bfloat16), w2.astype(jnp.bfloat16),
                 preferred_element_type=jnp.float32)
    h2 = jnp.maximum(h2 + b2, 0.0).reshape(B, N, -1)
    pooled = jnp.max(h2, axis=1)
    g = jnp.maximum(jnp.dot(pooled, w3, preferred_element_type=jnp.float32) + b3, 0.0)
    return jnp.dot(g, w4, preferred_element_type=jnp.float32) + b4


# --------------------------------- main ---------------------------------------
if __name__ == "__main__":
    key = jax.random.PRNGKey(0)
    k_x, k_p = jax.random.split(key)

    # MiniPointNet(input_channel=4, per_point_mlp=[32, 64],
    #              hidden_mlp=[32], output_size=8)
    B, C_in, N = 2, 4, 56            # N=56 with tile_n=16 -> 4 N-tiles + masked tail
    per_point_mlp = [32, 64]
    hidden_mlp = [32]
    output_size = 8

    x = jax.random.normal(k_x, (B, C_in, N), jnp.float32)          # (B, C, N)
    params = make_params(k_p, C_in, per_point_mlp, hidden_mlp, output_size)
    kparams = pad_params(params)

    out = mini_pointnet_forward(x, kparams, output_size, tile_b=8, tile_n=16)
    out = jax.block_until_ready(out)

    ref = reference_forward(x, params)
    assert out.shape == (B, output_size), out.shape
    assert jnp.allclose(out, ref, atol=1e-3, rtol=1e-3), (out, ref)

    print("KERNEL_OK")
</pallas_src>

<mosaic_0001>
module attributes {stable_mosaic.version = 11 : i64} {
  func.func @kernel(%arg0: i32, %arg1: i32, %arg2: memref<2x16x4xbf16, #tpu.memory_space<vmem>>, %arg3: memref<4x128xf32, #tpu.memory_space<vmem>>, %arg4: memref<1x128xf32, #tpu.memory_space<vmem>>, %arg5: memref<128x128xbf16, #tpu.memory_space<vmem>>, %arg6: memref<1x128xf32, #tpu.memory_space<vmem>>, %arg7: memref<128x128xf32, #tpu.memory_space<vmem>>, %arg8: memref<1x128xf32, #tpu.memory_space<vmem>>, %arg9: memref<128x128xf32, #tpu.memory_space<vmem>>, %arg10: memref<1x128xf32, #tpu.memory_space<vmem>>, %arg11: memref<2x128xf32, #tpu.memory_space<vmem>>, %arg12: memref<2x128xf32, #tpu.memory_space<vmem>>) attributes {dimension_semantics = [#tpu.dimension_semantics<parallel>, #tpu.dimension_semantics<arbitrary>], iteration_bounds = array<i64: 1, 4>, scalar_prefetch = 0 : i64, scratch_operands = 1 : i64, tpu.core_type = #tpu.core_type<tc>, window_params = [{transform_indices = @transform_0, window_bounds = array<i64: 2, 16, 4>}, {pipeline_mode = #tpu.pipeline_mode<synchronous>, transform_indices = @transform_1, window_bounds = array<i64: 4, 128>}, {pipeline_mode = #tpu.pipeline_mode<synchronous>, transform_indices = @transform_2, window_bounds = array<i64: 1, 128>}, {pipeline_mode = #tpu.pipeline_mode<synchronous>, transform_indices = @transform_3, window_bounds = array<i64: 128, 128>}, {pipeline_mode = #tpu.pipeline_mode<synchronous>, transform_indices = @transform_4, window_bounds = array<i64: 1, 128>}, {pipeline_mode = #tpu.pipeline_mode<synchronous>, transform_indices = @transform_5, window_bounds = array<i64: 128, 128>}, {pipeline_mode = #tpu.pipeline_mode<synchronous>, transform_indices = @transform_6, window_bounds = array<i64: 1, 128>}, {pipeline_mode = #tpu.pipeline_mode<synchronous>, transform_indices = @transform_7, window_bounds = array<i64: 128, 128>}, {pipeline_mode = #tpu.pipeline_mode<synchronous>, transform_indices = @transform_8, window_bounds = array<i64: 1, 128>}, {transform_indices = @transform_9, window_bounds = array<i64: 2, 128>}]} {
    %c0_i32 = arith.constant 0 : i32
    %0 = arith.cmpi eq, %arg1, %c0_i32 : i32
    %1 = arith.extui %0 : i1 to i32
    %c0_i32_0 = arith.constant 0 : i32
    %2 = arith.cmpi ne, %1, %c0_i32_0 : i32
    scf.if %2 {
      %cst_24 = arith.constant 0.000000e+00 : f32
      %69 = vector.broadcast %cst_24 : f32 to vector<2x128xf32>
      %c0_25 = arith.constant 0 : index
      %c0_26 = arith.constant 0 : index
      %70 = vector.load %arg12[%c0_25, %c0_26] : memref<2x128xf32, #tpu.memory_space<vmem>>, vector<2x128xf32>
      tpu.vector_store %arg12[%c0_25, %c0_26], %69 {strides = array<i32>} : memref<2x128xf32, #tpu.memory_space<vmem>>, vector<2x128xf32>,
    } else {
    }
    %c0 = arith.constant 0 : index
    %c0_1 = arith.constant 0 : index
    %c0_2 = arith.constant 0 : index
    %3 = vector.load %arg2[%c0, %c0_1, %c0_2] : memref<2x16x4xbf16, #tpu.memory_space<vmem>>, vector<2x16x4xbf16>
    %4 = arith.extf %3 : vector<2x16x4xbf16> to vector<2x16x4xf32>
    %cst = arith.constant 0.000000e+00 : f32
    %5 = vector.broadcast %cst : f32 to vector<2x16x128xf32>
    %6 = vector.extract_strided_slice %4 {offsets = [0, 0, 0], sizes = [2, 16, 1], strides = [1, 1, 1]} : vector<2x16x4xf32> to vector<2x16x1xf32>
    %c0_3 = arith.constant 0 : index
    %c0_4 = arith.constant 0 : index
    %7 = vector.load %arg3[%c0_3, %c0_4] : memref<4x128xf32, #tpu.memory_space<vmem>>, vector<1x128xf32>
    %8 = vector.shape_cast %7 : vector<1x128xf32> to vector<128xf32>
    %9 = vector.shape_cast %8 : vector<128xf32> to vector<1x1x128xf32>
    %10 = vector.broadcast %6 : vector<2x16x1xf32> to vector<2x16x128xf32>
    %11 = vector.broadcast %9 : vector<1x1x128xf32> to vector<2x16x128xf32>
    %12 = arith.mulf %10, %11 : vector<2x16x128xf32>
    %13 = arith.addf %5, %12 : vector<2x16x128xf32>
    %14 = vector.extract_strided_slice %4 {offsets = [0, 0, 1], sizes = [2, 16, 1], strides = [1, 1, 1]} : vector<2x16x4xf32> to vector<2x16x1xf32>
    %c1 = arith.constant 1 : index
    %c0_5 = arith.constant 0 : index
    %15 = vector.load %arg3[%c1, %c0_5] : memref<4x128xf32, #tpu.memory_space<vmem>>, vector<1x128xf32>
    %16 = vector.shape_cast %15 : vector<1x128xf32> to vector<128xf32>
    %17 = vector.shape_cast %16 : vector<128xf32> to vector<1x1x128xf32>
    %18 = vector.broadcast %14 : vector<2x16x1xf32> to vector<2x16x128xf32>
    %19 = vector.broadcast %17 : vector<1x1x128xf32> to vector<2x16x128xf32>
    %20 = arith.mulf %18, %19 : vector<2x16x128xf32>
    %21 = arith.addf %13, %20 : vector<2x16x128xf32>
    %22 = vector.extract_strided_slice %4 {offsets = [0, 0, 2], sizes = [2, 16, 1], strides = [1, 1, 1]} : vector<2x16x4xf32> to vector<2x16x1xf32>
    %c2 = arith.constant 2 : index
    %c0_6 = arith.constant 0 : index
    %23 = vector.load %arg3[%c2, %c0_6] : memref<4x128xf32, #tpu.memory_space<vmem>>, vector<1x128xf32>
    %24 = vector.shape_cast %23 : vector<1x128xf32> to vector<128xf32>
    %25 = vector.shape_cast %24 : vector<128xf32> to vector<1x1x128xf32>
    %26 = vector.broadcast %22 : vector<2x16x1xf32> to vector<2x16x128xf32>
    %27 = vector.broadcast %25 : vector<1x1x128xf32> to vector<2x16x128xf32>
    %28 = arith.mulf %26, %27 : vector<2x16x128xf32>
    %29 = arith.addf %21, %28 : vector<2x16x128xf32>
    %30 = vector.extract_strided_slice %4 {offsets = [0, 0, 3], sizes = [2, 16, 1], strides = [1, 1, 1]} : vector<2x16x4xf32> to vector<2x16x1xf32>
    %c3 = arith.constant 3 : index
    %c0_7 = arith.constant 0 : index
    %31 = vector.load %arg3[%c3, %c0_7] : memref<4x128xf32, #tpu.memory_space<vmem>>, vector<1x128xf32>
    %32 = vector.shape_cast %31 : vector<1x128xf32> to vector<128xf32>
    %33 = vector.shape_cast %32 : vector<128xf32> to vector<1x1x128xf32>
    %34 = vector.broadcast %30 : vector<2x16x1xf32> to vector<2x16x128xf32>
    %35 = vector.broadcast %33 : vector<1x1x128xf32> to vector<2x16x128xf32>
    %36 = arith.mulf %34, %35 : vector<2x16x128xf32>
    %37 = arith.addf %29, %36 : vector<2x16x128xf32>
    %c0_8 = arith.constant 0 : index
    %c0_9 = arith.constant 0 : index
    %38 = vector.load %arg4[%c0_8, %c0_9] : memref<1x128xf32, #tpu.memory_space<vmem>>, vector<1x128xf32>
    %39 = vector.shape_cast %38 : vector<1x128xf32> to vector<1x1x128xf32>
    %40 = vector.broadcast %39 : vector<1x1x128xf32> to vector<2x16x128xf32>
    %41 = arith.addf %37, %40 : vector<2x16x128xf32>
    %cst_10 = arith.constant 0.000000e+00 : f32
    %42 = vector.broadcast %cst_10 : f32 to vector<2x16x128xf32>
    %43 = arith.maximumf %41, %42 : vector<2x16x128xf32>
    %44 = vector.shape_cast %43 : vector<2x16x128xf32> to vector<32x128xf32>
    %45 = arith.truncf %44 : vector<32x128xf32> to vector<32x128xbf16>
    %c0_11 = arith.constant 0 : index
    %c0_12 = arith.constant 0 : index
    %46 = vector.load %arg5[%c0_11, %c0_12] : memref<128x128xbf16, #tpu.memory_space<vmem>>, vector<128x128xbf16>
    %cst_13 = arith.constant dense<0.000000e+00> : vector<32x128xf32>
    %47 = tpu.matmul %45, %46, %cst_13 {dimension_numbers = #tpu.dot_dimension_numbers<[1], [0], [0], [1], [0, 0, 1, 1], [], []>} : vector<32x128xbf16>, vector<128x128xbf16>, vector<32x128xf32> -> vector<32x128xf32>
    %c0_14 = arith.constant 0 : index
    %c0_15 = arith.constant 0 : index
    %48 = vector.load %arg6[%c0_14, %c0_15] : memref<1x128xf32, #tpu.memory_space<vmem>>, vector<1x128xf32>
    %49 = vector.broadcast %48 : vector<1x128xf32> to vector<32x128xf32>
    %50 = arith.addf %47, %49 : vector<32x128xf32>
    %cst_16 = arith.constant 0.000000e+00 : f32
    %51 = vector.broadcast %cst_16 : f32 to vector<32x128xf32>
    %52 = arith.maximumf %50, %51 : vector<32x128xf32>
    %53 = vector.shape_cast %52 : vector<32x128xf32> to vector<2x16x128xf32>
    %c16_i32 = arith.constant 16 : i32
    %54 = arith.muli %arg1, %c16_i32 : i32
    %55 = tpu.iota {dimensions = array<i32: 1>} : vector<2x16x128xi32>
    %56 = vector.broadcast %54 : i32 to vector<2x16x128xi32>
    %57 = arith.addi %56, %55 : vector<2x16x128xi32>
    %c56_i32 = arith.constant 56 : i32
    %58 = vector.broadcast %c56_i32 : i32 to vector<2x16x128xi32>
    %59 = arith.cmpi slt, %57, %58 : vector<2x16x128xi32>
    %cst_17 = arith.constant 0.000000e+00 : f32
    %60 = vector.broadcast %cst_17 : f32 to vector<2x16x128xf32>
    %61 = arith.select %59, %53, %60 : vector<2x16x128xi1>, vector<2x16x128xf32>
    %c0_18 = arith.constant 0 : index
    %c0_19 = arith.constant 0 : index
    %62 = vector.load %arg12[%c0_18, %c0_19] : memref<2x128xf32, #tpu.memory_space<vmem>>, vector<2x128xf32>
    %cst_20 = arith.constant dense<0xFF800000> : vector<2x128xf32>
    %63 = vector.multi_reduction <maximumf>, %61, %cst_20 [1] : vector<2x16x128xf32> to vector<2x128xf32>
    %64 = arith.maximumf %62, %63 : vector<2x128xf32>
    %c0_21 = arith.constant 0 : index
    %c0_22 = arith.constant 0 : index
    %65 = vector.load %arg12[%c0_21, %c0_22] : memref<2x128xf32, #tpu.memory_space<vmem>>, vector<2x128xf32>
    tpu.vector_store %arg12[%c0_21, %c0_22], %64 {strides = array<i32>} : memref<2x128xf32, #tpu.memory_space<vmem>>, vector<2x128xf32>,
    %c3_i32 = arith.constant 3 : i32
    %66 = arith.cmpi eq, %arg1, %c3_i32 : i32
    %67 = arith.extui %66 : i1 to i32
    %c0_i32_23 = arith.constant 0 : i32
    %68 = arith.cmpi ne, %67, %c0_i32_23 : i32
    scf.if %68 {
      %c0_24 = arith.constant 0 : index
      %c0_25 = arith.constant 0 : index
      %69 = vector.load %arg12[%c0_24, %c0_25] : memref<2x128xf32, #tpu.memory_space<vmem>>, vector<2x128xf32>
      %c0_26 = arith.constant 0 : index
      %c0_27 = arith.constant 0 : index
      %70 = vector.load %arg7[%c0_26, %c0_27] : memref<128x128xf32, #tpu.memory_space<vmem>>, vector<128x128xf32>
      %cst_28 = arith.constant dense<0.000000e+00> : vector<2x128xf32>
      %71 = tpu.matmul %69, %70, %cst_28 {dimension_numbers = #tpu.dot_dimension_numbers<[1], [0], [0], [1], [0, 0, 1, 1], [], []>} : vector<2x128xf32>, vector<128x128xf32>, vector<2x128xf32> -> vector<2x128xf32>
      %c0_29 = arith.constant 0 : index
      %c0_30 = arith.constant 0 : index
      %72 = vector.load %arg8[%c0_29, %c0_30] : memref<1x128xf32, #tpu.memory_space<vmem>>, vector<1x128xf32>
      %73 = vector.broadcast %72 : vector<1x128xf32> to vector<2x128xf32>
      %74 = arith.addf %71, %73 : vector<2x128xf32>
      %cst_31 = arith.constant 0.000000e+00 : f32
      %75 = vector.broadcast %cst_31 : f32 to vector<2x128xf32>
      %76 = arith.maximumf %74, %75 : vector<2x128xf32>
      %c0_32 = arith.constant 0 : index
      %c0_33 = arith.constant 0 : index
      %77 = vector.load %arg9[%c0_32, %c0_33] : memref<128x128xf32, #tpu.memory_space<vmem>>, vector<128x128xf32>
      %cst_34 = arith.constant dense<0.000000e+00> : vector<2x128xf32>
      %78 = tpu.matmul %76, %77, %cst_34 {dimension_numbers = #tpu.dot_dimension_numbers<[1], [0], [0], [1], [0, 0, 1, 1], [], []>} : vector<2x128xf32>, vector<128x128xf32>, vector<2x128xf32> -> vector<2x128xf32>
      %c0_35 = arith.constant 0 : index
      %c0_36 = arith.constant 0 : index
      %79 = vector.load %arg10[%c0_35, %c0_36] : memref<1x128xf32, #tpu.memory_space<vmem>>, vector<1x128xf32>
      %80 = vector.broadcast %79 : vector<1x128xf32> to vector<2x128xf32>
      %81 = arith.addf %78, %80 : vector<2x128xf32>
      %c0_37 = arith.constant 0 : index
      %c0_38 = arith.constant 0 : index
      %82 = vector.load %arg11[%c0_37, %c0_38] : memref<2x128xf32, #tpu.memory_space<vmem>>, vector<2x128xf32>
      tpu.vector_store %arg11[%c0_37, %c0_38], %81 {strides = array<i32>} : memref<2x128xf32, #tpu.memory_space<vmem>>, vector<2x128xf32>,
    } else {
    }
    return
  }
  func.func @transform_0(%arg0: i32, %arg1: i32) -> (i32, i32, i32) {
    %c0_i32 = arith.constant 0 : i32
    %c0_i32_0 = arith.constant 0 : i32
    return %arg0, %arg1, %c0_i32 : i32, i32, i32
  }
  func.func @transform_1(%arg0: i32, %arg1: i32) -> (i32, i32) {
    %c0_i32 = arith.constant 0 : i32
    %c0_i32_0 = arith.constant 0 : i32
    %c0_i32_1 = arith.constant 0 : i32
    return %c0_i32, %c0_i32_0 : i32, i32
  }
  func.func @transform_2(%arg0: i32, %arg1: i32) -> (i32, i32) {
    %c0_i32 = arith.constant 0 : i32
    %c0_i32_0 = arith.constant 0 : i32
    %c0_i32_1 = arith.constant 0 : i32
    return %c0_i32, %c0_i32_0 : i32, i32
  }
  func.func @transform_3(%arg0: i32, %arg1: i32) -> (i32, i32) {
    %c0_i32 = arith.constant 0 : i32
    %c0_i32_0 = arith.constant 0 : i32
    %c0_i32_1 = arith.constant 0 : i32
    return %c0_i32, %c0_i32_0 : i32, i32
  }
  func.func @transform_4(%arg0: i32, %arg1: i32) -> (i32, i32) {
    %c0_i32 = arith.constant 0 : i32
    %c0_i32_0 = arith.constant 0 : i32
    %c0_i32_1 = arith.constant 0 : i32
    return %c0_i32, %c0_i32_0 : i32, i32
  }
  func.func @transform_5(%arg0: i32, %arg1: i32) -> (i32, i32) {
    %c0_i32 = arith.constant 0 : i32
    %c0_i32_0 = arith.constant 0 : i32
    %c0_i32_1 = arith.constant 0 : i32
    return %c0_i32, %c0_i32_0 : i32, i32
  }
  func.func @transform_6(%arg0: i32, %arg1: i32) -> (i32, i32) {
    %c0_i32 = arith.constant 0 : i32
    %c0_i32_0 = arith.constant 0 : i32
    %c0_i32_1 = arith.constant 0 : i32
    return %c0_i32, %c0_i32_0 : i32, i32
  }
  func.func @transform_7(%arg0: i32, %arg1: i32) -> (i32, i32) {
    %c0_i32 = arith.constant 0 : i32
    %c0_i32_0 = arith.constant 0 : i32
    %c0_i32_1 = arith.constant 0 : i32
    return %c0_i32, %c0_i32_0 : i32, i32
  }
  func.func @transform_8(%arg0: i32, %arg1: i32) -> (i32, i32) {
    %c0_i32 = arith.constant 0 : i32
    %c0_i32_0 = arith.constant 0 : i32
    %c0_i32_1 = arith.constant 0 : i32
    return %c0_i32, %c0_i32_0 : i32, i32
  }
  func.func @transform_9(%arg0: i32, %arg1: i32) -> (i32, i32) {
    %c0_i32 = arith.constant 0 : i32
    %c0_i32_0 = arith.constant 0 : i32
    return %arg0, %c0_i32 : i32, i32
  }
}

</mosaic_0001>

<llo_original>
// kernel: tpu_custom_call.1
$region0: #{tpu_custom_call.1}
  #allocation0 [shape = 'u32[]', space=smem, size = 0x4, offset = 0x4, fixed_abs, tag = 'smem constant byte address 0x4 - core index']
  #allocation1 [shape = 'u32[144,128]{1,0:T(1,128)}', space=vmem, size = 0x12000, scoped, tag = 'internal scratch']
  #allocation2 [shape = 'f32[2,128]{1,0:T(2,128)}', space=vmem, size = 0x400, scoped, tag = 'scratch operand']
  %s0 = inlined_call_operand.vmem [shape: bf16[2,64,4], index: 0, kind: input, shape index: {}]
  %s1 = inlined_call_operand.vmem [shape: f32[4,128], index: 1, kind: input, shape index: {}]
  %s2 = inlined_call_operand.vmem [shape: f32[1,128], index: 2, kind: input, shape index: {}]
  %s3 = inlined_call_operand.vmem [shape: bf16[128,128], index: 3, kind: input, shape index: {}]
  %s4 = inlined_call_operand.vmem [shape: f32[1,128], index: 4, kind: input, shape index: {}]
  %s5 = inlined_call_operand.hbm [shape: f32[128,128], index: 5, kind: input, shape index: {}]
  %s6 = inlined_call_operand.vmem [shape: f32[1,128], index: 6, kind: input, shape index: {}]
  %s7 = inlined_call_operand.hbm [shape: f32[128,128], index: 7, kind: input, shape index: {}]
  %s8 = inlined_call_operand.vmem [shape: f32[1,128], index: 8, kind: input, shape index: {}]
  %s9 = inlined_call_operand.hbm [shape: f32[2,128], index: 9, kind: output, shape index: {}]
  %s10 = sld [smem:[#allocation0]]
  $region126: #{tpu_custom_call.1} parent=0
    _
  %s12 = ssub.s32 1, %s10
  %s13 = scalar_select 0, %s12, %s10
  $region1: #{tpu_custom_call.1} parent=0
    #allocation3 [shape = 'u8[16384]{0}', space=vmem, size = 0x4000, scoped, tag = 'input window, operand 0']
    #allocation4 [shape = 'u8[65536]{0}', space=vmem, size = 0x10000, scoped, tag = 'input window, operand 5, single buffered']
    #allocation5 [shape = 's32[2]{0}', space=sflag, size = 0x8, scoped, tag = 'scoped memory for tpu_custom_call.1']
    #allocation6 [shape = 's32[2]{0}', space=sflag, size = 0x8, scoped, tag = 'scoped memory for tpu_custom_call.1']
    #allocation7 [shape = 'u8[65536]{0}', space=vmem, size = 0x10000, scoped, tag = 'input window, operand 7, single buffered']
    #allocation8 [shape = 's32[1]{0}', space=sflag, size = 0x4, scoped, tag = 'scoped memory for tpu_custom_call.1']
    #allocation9 [shape = 'u8[1024]{0}', space=vmem, size = 0x400, scoped, tag = 'output window, operand 0, single buffered']
    %14 = vsyncpa [#allocation5], 0
    %15 = vsyncpa [#allocation8], 0
    %16 = vsyncpa [#allocation6], 0
    loop: start=0, step=1, limit=6
    $region2: #{tpu_custom_call.1} parent=1 // loop_pre_header
      _
    $region3: #{tpu_custom_call.1} parent=1 // loop_header
      %s18 = sphi 0, %s22
      %p19 = scmp.ge.s32.totalorder %s18, 6
      %s25 = sphi 0, %s37
      %s26 = sphi 0, %s33
      %s27 = sphi 0, %s25
      %s28 = sphi 0, %s26
      %s29 = sphi 0, %s27
      %s30 = sphi 0, %s28
      %s42 = sphi 0, %s44
      %s45 = sphi 0, %s42
      %s46 = sphi 0, %s45
      %s62 = sphi 0, %s46
      %s66 = sphi 0, %s66
      %s68 = sphi 0, %s66
      %s69 = sphi 0, %s68
      %s83 = sphi 0, %s69
      %s87 = sphi 0, %s87
      %s89 = sphi 0, %s87
      %s90 = sphi 0, %s89
      %s104 = sphi 0, %s90
      %s108 = sphi 0, %s108
      %s110 = sphi 0, %s108
      %s111 = sphi 0, %s110
      %s125 = sphi 0, %s111
      %s129 = sphi 0, %s129
      %s131 = sphi 0, %s129
      %s132 = sphi 0, %s131
      %s146 = sphi 0, %s132
      %s150 = sphi 0, %s150
      %s152 = sphi 0, %s150
      %s153 = sphi 0, %s152
      %s167 = sphi 0, %s153
      %s171 = sphi 0, %s171
      %s173 = sphi 0, %s171
      %s174 = sphi 0, %s173
      %s188 = sphi 0, %s174
      %s192 = sphi 0, %s192
      %s194 = sphi 0, %s192
      %s195 = sphi 0, %s194
      %s209 = sphi 0, %s195
      %s213 = sphi 0, %s213
      %s215 = sphi 0, %s213
      %s216 = sphi 0, %s215
      %s230 = sphi 0, %s216
      %s236 = sphi 0, %s238
      %s239 = sphi 0, %s236
      %s240 = sphi 0, %s239
      %s256 = sphi 0, %s240
    $region4: #{tpu_custom_call.1} parent=1 // loop_header_branch
      %21 = sbr.rel (%p19) target = $region8
    $region5: #{tpu_custom_call.1} parent=1 // loop_body
      %s23 = ssub.s32 %s18, 1
      %s24 = ssub.s32 %s18, 2
      %s31 = sadd.s32 1, %s26
      %p32 = scmp.ge.s32.totalorder %s31, 4
      %s33 = scalar_select %p32, 0, %s31
      %s34 = sadd.s32 1, %s25
      %s35 = scalar_select %p32, %s34, %s25
      %p36 = scmp.ge.s32.totalorder %s35, 1
      %s37 = scalar_select %p36, 0, %s35
      %s38 = ssub.s32 %s25, %s37
      %s39 = ssub.s32 %s26, %s33
      %s40 = sor.u32 %s38, %s39
      %p41 = scmp.eq.s32.totalorder %s40, 0
      %s43 = sadd.s32 %s42, 1
      %s44 = scalar_select %p41, %s42, %s43
      %p47 = pneg %p41
      %p48 = scmp.eq.s32.totalorder %s18, 3
      %p49 = por %p47, %p48
      %p50 = scmp.ne.s32.totalorder %s42, %s45
      %p51 = scmp.eq.s32.totalorder %s18, 0
      %p52 = por %p50, %p51
      %p53 = scmp.ne.s32.totalorder %s42, %s45
      %p54 = scmp.eq.s32.totalorder %s23, 3
      %p55 = por %p53, %p54
      %p56 = scmp.ne.s32.totalorder %s45, %s46
      %p57 = scmp.eq.s32.totalorder %s23, 0
      %p58 = por %p56, %p57
      %p59 = scmp.ne.s32.totalorder %s45, %s46
      %p60 = scmp.eq.s32.totalorder %s24, 3
      %p61 = por %p59, %p60
      %p63 = scmp.ne.s32.totalorder %s46, %s62
      %p64 = scmp.eq.s32.totalorder %s24, 0
      %p65 = por %p63, %p64
      %s67 = sadd.s32 %s66, 1
      %p70 = scmp.eq.s32.totalorder %s18, 3
      %p71 = scmp.ne.s32.totalorder %s66, %s68
      %p72 = scmp.eq.s32.totalorder %s18, 0
      %p73 = por %p71, %p72
      %p74 = scmp.ne.s32.totalorder %s66, %s68
      %p75 = scmp.eq.s32.totalorder %s23, 3
      %p76 = por %p74, %p75
      %p77 = scmp.ne.s32.totalorder %s68, %s69
      %p78 = scmp.eq.s32.totalorder %s23, 0
      %p79 = por %p77, %p78
      %p80 = scmp.ne.s32.totalorder %s68, %s69
      %p81 = scmp.eq.s32.totalorder %s24, 3
      %p82 = por %p80, %p81
      %p84 = scmp.ne.s32.totalorder %s69, %s83
      %p85 = scmp.eq.s32.totalorder %s24, 0
      %p86 = por %p84, %p85
      %s88 = sadd.s32 %s87, 1
      %p91 = scmp.eq.s32.totalorder %s18, 3
      %p92 = scmp.ne.s32.totalorder %s87, %s89
      %p93 = scmp.eq.s32.totalorder %s18, 0
      %p94 = por %p92, %p93
      %p95 = scmp.ne.s32.totalorder %s87, %s89
      %p96 = scmp.eq.s32.totalorder %s23, 3
      %p97 = por %p95, %p96
      %p98 = scmp.ne.s32.totalorder %s89, %s90
      %p99 = scmp.eq.s32.totalorder %s23, 0
      %p100 = por %p98, %p99
      %p101 = scmp.ne.s32.totalorder %s89, %s90
      %p102 = scmp.eq.s32.totalorder %s24, 3
      %p103 = por %p101, %p102
      %p105 = scmp.ne.s32.totalorder %s90, %s104
      %p106 = scmp.eq.s32.totalorder %s24, 0
      %p107 = por %p105, %p106
      %s109 = sadd.s32 %s108, 1
      %p112 = scmp.eq.s32.totalorder %s18, 3
      %p113 = scmp.ne.s32.totalorder %s108, %s110
      %p114 = scmp.eq.s32.totalorder %s18, 0
      %p115 = por %p113, %p114
      %p116 = scmp.ne.s32.totalorder %s108, %s110
      %p117 = scmp.eq.s32.totalorder %s23, 3
      %p118 = por %p116, %p117
      %p119 = scmp.ne.s32.totalorder %s110, %s111
      %p120 = scmp.eq.s32.totalorder %s23, 0
      %p121 = por %p119, %p120
      %p122 = scmp.ne.s32.totalorder %s110, %s111
      %p123 = scmp.eq.s32.totalorder %s24, 3
      %p124 = por %p122, %p123
      %p126 = scmp.ne.s32.totalorder %s111, %s125
      %p127 = scmp.eq.s32.totalorder %s24, 0
      %p128 = por %p126, %p127
      %s130 = sadd.s32 %s129, 1
      %p133 = scmp.eq.s32.totalorder %s18, 3
      %p134 = scmp.ne.s32.totalorder %s129, %s131
      %p135 = scmp.eq.s32.totalorder %s18, 0
      %p136 = por %p134, %p135
      %p137 = scmp.ne.s32.totalorder %s129, %s131
      %p138 = scmp.eq.s32.totalorder %s23, 3
      %p139 = por %p137, %p138
      %p140 = scmp.ne.s32.totalorder %s131, %s132
      %p141 = scmp.eq.s32.totalorder %s23, 0
      %p142 = por %p140, %p141
      %p143 = scmp.ne.s32.totalorder %s131, %s132
      %p144 = scmp.eq.s32.totalorder %s24, 3
      %p145 = por %p143, %p144
      %p147 = scmp.ne.s32.totalorder %s132, %s146
      %p148 = scmp.eq.s32.totalorder %s24, 0
      %p149 = por %p147, %p148
      %s151 = sadd.s32 %s150, 1
      %p154 = scmp.eq.s32.totalorder %s18, 3
      %p155 = scmp.ne.s32.totalorder %s150, %s152
      %p156 = scmp.eq.s32.totalorder %s18, 0
      %p157 = por %p155, %p156
      %p158 = scmp.ne.s32.totalorder %s150, %s152
      %p159 = scmp.eq.s32.totalorder %s23, 3
      %p160 = por %p158, %p159
      %p161 = scmp.ne.s32.totalorder %s152, %s153
      %p162 = scmp.eq.s32.totalorder %s23, 0
      %p163 = por %p161, %p162
      %p164 = scmp.ne.s32.totalorder %s152, %s153
      %p165 = scmp.eq.s32.totalorder %s24, 3
      %p166 = por %p164, %p165
      %p168 = scmp.ne.s32.totalorder %s153, %s167
      %p169 = scmp.eq.s32.totalorder %s24, 0
      %p170 = por %p168, %p169
      %s172 = sadd.s32 %s171, 1
      %p175 = scmp.eq.s32.totalorder %s18, 3
      %p176 = scmp.ne.s32.totalorder %s171, %s173
      %p177 = scmp.eq.s32.totalorder %s18, 0
      %p178 = por %p176, %p177
      %p179 = scmp.ne.s32.totalorder %s171, %s173
      %p180 = scmp.eq.s32.totalorder %s23, 3
      %p181 = por %p179, %p180
      %p182 = scmp.ne.s32.totalorder %s173, %s174
      %p183 = scmp.eq.s32.totalorder %s23, 0
      %p184 = por %p182, %p183
      %p185 = scmp.ne.s32.totalorder %s173, %s174
      %p186 = scmp.eq.s32.totalorder %s24, 3
      %p187 = por %p185, %p186
      %p189 = scmp.ne.s32.totalorder %s174, %s188
      %p190 = scmp.eq.s32.totalorder %s24, 0
      %p191 = por %p189, %p190
      %s193 = sadd.s32 %s192, 1
      %p196 = scmp.eq.s32.totalorder %s18, 3
      %p197 = scmp.ne.s32.totalorder %s192, %s194
      %p198 = scmp.eq.s32.totalorder %s18, 0
      %p199 = por %p197, %p198
      %p200 = scmp.ne.s32.totalorder %s192, %s194
      %p201 = scmp.eq.s32.totalorder %s23, 3
      %p202 = por %p200, %p201
      %p203 = scmp.ne.s32.totalorder %s194, %s195
      %p204 = scmp.eq.s32.totalorder %s23, 0
      %p205 = por %p203, %p204
      %p206 = scmp.ne.s32.totalorder %s194, %s195
      %p207 = scmp.eq.s32.totalorder %s24, 3
      %p208 = por %p206, %p207
      %p210 = scmp.ne.s32.totalorder %s195, %s209
      %p211 = scmp.eq.s32.totalorder %s24, 0
      %p212 = por %p210, %p211
      %s214 = sadd.s32 %s213, 1
      %p217 = scmp.eq.s32.totalorder %s18, 3
      %p218 = scmp.ne.s32.totalorder %s213, %s215
      %p219 = scmp.eq.s32.totalorder %s18, 0
      %p220 = por %p218, %p219
      %p221 = scmp.ne.s32.totalorder %s213, %s215
      %p222 = scmp.eq.s32.totalorder %s23, 3
      %p223 = por %p221, %p222
      %p224 = scmp.ne.s32.totalorder %s215, %s216
      %p225 = scmp.eq.s32.totalorder %s23, 0
      %p226 = por %p224, %p225
      %p227 = scmp.ne.s32.totalorder %s215, %s216
      %p228 = scmp.eq.s32.totalorder %s24, 3
      %p229 = por %p227, %p228
      %p231 = scmp.ne.s32.totalorder %s216, %s230
      %p232 = scmp.eq.s32.totalorder %s24, 0
      %p233 = por %p231, %p232
      %s234 = ssub.s32 %s25, %s37
      %p235 = scmp.eq.s32.totalorder %s234, 0
      %s237 = sadd.s32 %s236, 1
      %s238 = scalar_select %p235, %s236, %s237
      %p241 = pneg %p235
      %p242 = scmp.eq.s32.totalorder %s18, 3
      %p243 = por %p241, %p242
      %p244 = scmp.ne.s32.totalorder %s236, %s239
      %p245 = scmp.eq.s32.totalorder %s18, 0
      %p246 = por %p244, %p245
      %p247 = scmp.ne.s32.totalorder %s236, %s239
      %p248 = scmp.eq.s32.totalorder %s23, 3
      %p249 = por %p247, %p248
      %p250 = scmp.ne.s32.totalorder %s239, %s240
      %p251 = scmp.eq.s32.totalorder %s23, 0
      %p252 = por %p250, %p251
      %p253 = scmp.ne.s32.totalorder %s239, %s240
      %p254 = scmp.eq.s32.totalorder %s24, 3
      %p255 = por %p253, %p254
      %p257 = scmp.ne.s32.totalorder %s240, %s256
      %p258 = scmp.eq.s32.totalorder %s24, 0
      %p259 = por %p257, %p258
      %p260 = scmp.le.s32.totalorder 1, %s18
      %p261 = scmp.lt.s32.totalorder %s18, 5
      %p262 = pnand %p260, %p261
      %p263 = pneg %p262
      // Predicated region
      $region9: #{tpu_custom_call.1} parent=5 // pred_check
        _
      $region10: #{tpu_custom_call.1} parent=5 // pred_check_branch
        %265 = sbr.rel (%p262) target = $region12
      $region11: #{tpu_custom_call.1} parent=5 // pred_region
        %s266 = ssub.s32 %s18, 1
        // Predicated region
        $region13: #{tpu_custom_call.1} parent=11 // pred_check
          %p267 = pneg %p79
        $region14: #{tpu_custom_call.1} parent=11 // pred_check_branch
          %269 = sbr.rel (%p267) target = $region16
        $region15: #{tpu_custom_call.1} parent=11 // pred_region
          _
        $region16: #{tpu_custom_call.1} parent=11 // pred_fallthru
          _
        // Predicated region
        $region17: #{tpu_custom_call.1} parent=11 // pred_check
          %p270 = pneg %p100
        $region18: #{tpu_custom_call.1} parent=11 // pred_check_branch
          %272 = sbr.rel (%p270) target = $region20
        $region19: #{tpu_custom_call.1} parent=11 // pred_region
          _
        $region20: #{tpu_custom_call.1} parent=11 // pred_fallthru
          _
        // Predicated region
        $region21: #{tpu_custom_call.1} parent=11 // pred_check
          %p273 = pneg %p121
        $region22: #{tpu_custom_call.1} parent=11 // pred_check_branch
          %275 = sbr.rel (%p273) target = $region24
        $region23: #{tpu_custom_call.1} parent=11 // pred_region
          _
        $region24: #{tpu_custom_call.1} parent=11 // pred_fallthru
          _
        // Predicated region
        $region25: #{tpu_custom_call.1} parent=11 // pred_check
          %p276 = pneg %p142
        $region26: #{tpu_custom_call.1} parent=11 // pred_check_branch
          %278 = sbr.rel (%p276) target = $region28
        $region27: #{tpu_custom_call.1} parent=11 // pred_region
          _
        $region28: #{tpu_custom_call.1} parent=11 // pred_fallthru
          _
        // Predicated region
        $region29: #{tpu_custom_call.1} parent=11 // pred_check
          %p279 = pneg %p163
        $region30: #{tpu_custom_call.1} parent=11 // pred_check_branch
          %281 = sbr.rel (%p279) target = $region32
        $region31: #{tpu_custom_call.1} parent=11 // pred_region
          %s283 = ssub.s32 2048, 2048
          %284 = vsyncadd [#allocation5], %s283
          %s285 = sshll.u32 [#allocation4], 4
          %s286 = int_to_ptr.vmem [resolvable:$true] %s285
          %291 = dma.hbm_to_vmem [thread:$0]  %s5, 2048, %s286, [#allocation5], 128, 128, 8
        $region32: #{tpu_custom_call.1} parent=11 // pred_fallthru
          _
        // Predicated region
        $region33: #{tpu_custom_call.1} parent=11 // pred_check
          %p292 = pneg %p184
        $region34: #{tpu_custom_call.1} parent=11 // pred_check_branch
          %294 = sbr.rel (%p292) target = $region36
        $region35: #{tpu_custom_call.1} parent=11 // pred_region
          _
        $region36: #{tpu_custom_call.1} parent=11 // pred_fallthru
          _
        // Predicated region
        $region37: #{tpu_custom_call.1} parent=11 // pred_check
          %p295 = pneg %p205
        $region38: #{tpu_custom_call.1} parent=11 // pred_check_branch
          %297 = sbr.rel (%p295) target = $region40
        $region39: #{tpu_custom_call.1} parent=11 // pred_region
          %s299 = ssub.s32 2048, 2048
          %300 = vsyncadd [#allocation8], %s299
          %s301 = sshll.u32 [#allocation7], 4
          %s302 = int_to_ptr.vmem [resolvable:$true] %s301
          %307 = dma.hbm_to_vmem [thread:$0]  %s7, 2048, %s302, [#allocation8], 128, 128, 8
        $region40: #{tpu_custom_call.1} parent=11 // pred_fallthru
          _
        // Predicated region
        $region41: #{tpu_custom_call.1} parent=11 // pred_check
          %p308 = pneg %p226
        $region42: #{tpu_custom_call.1} parent=11 // pred_check_branch
          %310 = sbr.rel (%p308) target = $region44
        $region43: #{tpu_custom_call.1} parent=11 // pred_region
          _
        $region44: #{tpu_custom_call.1} parent=11 // pred_fallthru
          _
      $region12: #{tpu_custom_call.1} parent=5 // pred_fallthru
        _
      %p311 = scmp.lt.s32.totalorder %s18, 4
      // Predicated region
      $region45: #{tpu_custom_call.1} parent=5 // pred_check
        %p312 = pneg %p311
      $region46: #{tpu_custom_call.1} parent=5 // pred_check_branch
        %314 = sbr.rel (%p312) target = $region48
      $region47: #{tpu_custom_call.1} parent=5 // pred_region
        // Predicated region
        $region49: #{tpu_custom_call.1} parent=47 // pred_check
          %p315 = pneg %p52
        $region50: #{tpu_custom_call.1} parent=47 // pred_check_branch
          %317 = sbr.rel (%p315) target = $region52
        $region51: #{tpu_custom_call.1} parent=47 // pred_region
          %s318 = sand.u32 %s42, 1
          %s319 = sand.u32 %s42, 1
          %s320 = smul.addr %s319, 16
          %s321 = scalar_lea.vmem [#allocation3], %s320
          %s322 = smul.u32 2, %s25
          %s323 = smul.u32 2, %s26
          %s324 = smul.addr %s322, 8
          %s325 = sadd.s32 %s323, %s324
          %s326 = smul.addr %s325, 4
          %s327 = scalar_lea.vmem %s0, %s326
          // Predicated region
          $region53: #{tpu_custom_call.1} parent=51 // pred_check
            _
          $region54: #{tpu_custom_call.1} parent=51 // pred_check_branch
            %329 = sbr.rel (0) target = $region56
          $region55: #{tpu_custom_call.1} parent=51 // pred_region
            // Predicated region
            $region57: #{tpu_custom_call.1} parent=55 // pred_check
              _
            $region58: #{tpu_custom_call.1} parent=55 // pred_check_branch
              %331 = sbr.rel target = $region60
            $region59: #{tpu_custom_call.1} parent=55 // pred_region
              // Predicated region
              $region72: #{tpu_custom_call.1} parent=59 // pred_check
                _
              $region73: #{tpu_custom_call.1} parent=59 // pred_check_branch
                %352 = sbr.rel (0) target = $region75
              $region74: #{tpu_custom_call.1} parent=59 // pred_region
                loop: start=0, step=1, limit=1
                $region76: #{tpu_custom_call.1} parent=74 // loop_pre_header
                  _
                $region77: #{tpu_custom_call.1} parent=74 // loop_header
                  %s354 = sphi 0, %s358
                  %p355 = scmp.ge.s32.totalorder %s354, 1
                  %s359 = sphi %s327, %s327
                  %s360 = sphi %s321, %s321
                $region78: #{tpu_custom_call.1} parent=74 // loop_header_branch
                  %357 = sbr.rel (%p355) target = $region82
                $region79: #{tpu_custom_call.1} parent=74 // loop_body
                  _
                $region80: #{tpu_custom_call.1} parent=74 // loop_footer
                  %s358 = sadd.s32 1, %s354
                $region81: #{tpu_custom_call.1} parent=74 // loop_footer_branch
                  %353 = sbr.rel target = $region77
                $region82: #{tpu_custom_call.1} parent=74 // loop_exit
                  _
                loop: start=0, step=1, limit=1
                $region83: #{tpu_custom_call.1} parent=74 // loop_pre_header
                  _
                $region84: #{tpu_custom_call.1} parent=74 // loop_header
                  %s363 = sphi 0, %s367
                  %p364 = scmp.ge.s32.totalorder %s363, 1
                  %s368 = sphi %s327, %s327
                  %s369 = sphi %s321, %s321
                $region85: #{tpu_custom_call.1} parent=74 // loop_header_branch
                  %366 = sbr.rel (%p364) target = $region89
                $region86: #{tpu_custom_call.1} parent=74 // loop_body
                  %v370 = vld [vmem:[%s368] sm:$0xf]
                  %371 = vst [vmem:[%s369] sm:$0xf] %v370
                  %v372 = vld [vmem:[%s368 + $0x4] sm:$0xf]
                  %373 = vst [vmem:[%s369 + $0x4] sm:$0xf] %v372
                  %v374 = vld [vmem:[%s368 + $0x20] sm:$0xf]
                  %375 = vst [vmem:[%s369 + $0x8] sm:$0xf] %v374
                  %v376 = vld [vmem:[%s368 + $0x24] sm:$0xf]
                  %377 = vst [vmem:[%s369 + $0xc] sm:$0xf] %v376
                $region87: #{tpu_custom_call.1} parent=74 // loop_footer
                  %s367 = sadd.s32 1, %s363
                $region88: #{tpu_custom_call.1} parent=74 // loop_footer_branch
                  %362 = sbr.rel target = $region84
                $region89: #{tpu_custom_call.1} parent=74 // loop_exit
                  _
              $region75: #{tpu_custom_call.1} parent=59 // pred_fallthru
                _
            $region60: #{tpu_custom_call.1} parent=55 // pred_fallthru
              _
            // Predicated region
            $region61: #{tpu_custom_call.1} parent=55 // pred_check
              _
            $region62: #{tpu_custom_call.1} parent=55 // pred_check_branch
              %333 = sbr.rel (0) target = $region64
            $region63: #{tpu_custom_call.1} parent=55 // pred_region
              loop: start=0, step=1, limit=1
              $region65: #{tpu_custom_call.1} parent=63 // loop_pre_header
                _
              $region66: #{tpu_custom_call.1} parent=63 // loop_header
                %s336 = sphi 0, %s340
                %p337 = scmp.ge.s32.totalorder %s336, 1
                %s341 = sphi %s327, %s327
                %s342 = sphi %s321, %s321
              $region67: #{tpu_custom_call.1} parent=63 // loop_header_branch
                %339 = sbr.rel (%p337) target = $region71
              $region68: #{tpu_custom_call.1} parent=63 // loop_body
                %v343 = vld [vmem:[%s341] sm:$0xf]
                %344 = vst [vmem:[%s342] sm:$0xf] %v343
                %v345 = vld [vmem:[%s341 + $0x4] sm:$0xf]
                %346 = vst [vmem:[%s342 + $0x4] sm:$0xf] %v345
                %v347 = vld [vmem:[%s341 + $0x20] sm:$0xf]
                %348 = vst [vmem:[%s342 + $0x8] sm:$0xf] %v347
                %v349 = vld [vmem:[%s341 + $0x24] sm:$0xf]
                %350 = vst [vmem:[%s342 + $0xc] sm:$0xf] %v349
              $region69: #{tpu_custom_call.1} parent=63 // loop_footer
                %s340 = sadd.s32 1, %s336
              $region70: #{tpu_custom_call.1} parent=63 // loop_footer_branch
                %335 = sbr.rel target = $region66
              $region71: #{tpu_custom_call.1} parent=63 // loop_exit
                _
            $region64: #{tpu_custom_call.1} parent=55 // pred_fallthru
              _
          $region56: #{tpu_custom_call.1} parent=51 // pred_fallthru
            _
          %378 = vnop
        $region52: #{tpu_custom_call.1} parent=47 // pred_fallthru
          _
      $region48: #{tpu_custom_call.1} parent=5 // pred_fallthru
        _
      %p379 = scmp.le.s32.totalorder 1, %s18
      %p380 = scmp.lt.s32.totalorder %s18, 5
      %p381 = pnand %p379, %p380
      %p382 = pneg %p381
      // Predicated region
      $region90: #{tpu_custom_call.1} parent=5 // pred_check
        _
      $region91: #{tpu_custom_call.1} parent=5 // pred_check_branch
        %384 = sbr.rel (%p381) target = $region93
      $region92: #{tpu_custom_call.1} parent=5 // pred_region
        %s385 = ssub.s32 %s18, 1
        %s386 = sand.u32 %s45, 1
        %s387 = sand.u32 %s45, 1
        %s388 = smul.addr %s387, 16
        %s389 = scalar_lea.vmem [#allocation3], %s388
        // Predicated region
        $region94: #{tpu_custom_call.1} parent=92 // pred_check
          %p390 = pneg %p58
        $region95: #{tpu_custom_call.1} parent=92 // pred_check_branch
          %392 = sbr.rel (%p390) target = $region97
        $region96: #{tpu_custom_call.1} parent=92 // pred_region
          _
        $region97: #{tpu_custom_call.1} parent=92 // pred_fallthru
          _
        // Predicated region
        $region98: #{tpu_custom_call.1} parent=92 // pred_check
          %p393 = pneg %p163
        $region99: #{tpu_custom_call.1} parent=92 // pred_check_branch
          %395 = sbr.rel (%p393) target = $region101
        $region100: #{tpu_custom_call.1} parent=92 // pred_region
          %396 = dma.done [#allocation5], 2048
        $region101: #{tpu_custom_call.1} parent=92 // pred_fallthru
          _
        // Predicated region
        $region102: #{tpu_custom_call.1} parent=92 // pred_check
          %p397 = pneg %p205
        $region103: #{tpu_custom_call.1} parent=92 // pred_check_branch
          %399 = sbr.rel (%p397) target = $region105
        $region104: #{tpu_custom_call.1} parent=92 // pred_region
          %400 = dma.done [#allocation8], 2048
        $region105: #{tpu_custom_call.1} parent=92 // pred_fallthru
          _
        %s401 = sand.u32 %s45, 1
        %s402 = sand.u32 %s45, 1
        %s403 = smul.addr %s402, 16
        %s404 = scalar_lea.vmem [#allocation3], %s403
        %p405 = pneg %p58
        %p406 = pneg %p55
        %p407 = pneg %p79
        %p408 = pneg %p76
        %p409 = pneg %p100
        %p410 = pneg %p97
        %p411 = pneg %p121
        %p412 = pneg %p118
        %p413 = pneg %p142
        %p414 = pneg %p139
        %p415 = pneg %p163
        %p416 = pneg %p160
        %p417 = pneg %p184
        %p418 = pneg %p181
        %p419 = pneg %p205
        %p420 = pneg %p202
        %p421 = pneg %p226
        %p422 = pneg %p223
        %p423 = pneg %p252
        %p424 = pneg %p249
        %s425 = smul.u32 2, %s27
        %s426 = smul.u32 2, %s28
        %p428 = scmp.eq.s32.totalorder %s28, 0
        // Predicated region
        $region106: #{tpu_custom_call.1} parent=92 // pred_check
          %p429 = pneg %p428
        $region107: #{tpu_custom_call.1} parent=92 // pred_check_branch
          %431 = sbr.rel (%p429) target = $region109
        $region108: #{tpu_custom_call.1} parent=92 // pred_region
          %432 = vst [vmem:[#allocation2] sm:$0x3] 0.0
        $region109: #{tpu_custom_call.1} parent=92 // pred_fallthru
          _
        %v433 = vld [vmem:[%s389] sm:$0xf]
        %v434 = vld [vmem:[%s389 + $0x4] sm:$0xf]
        %v435 = vld [vmem:[%s389 + $0x8] sm:$0xf]
        %v436 = vld [vmem:[%s389 + $0xc] sm:$0xf]
        %v437 = vunpack.c.l.bf16 %v433
        %v438 = vunpack.c.l.bf16 %v434
        %v439 = vunpack.c.l.bf16 %v435
        %v440 = vunpack.c.l.bf16 %v436
        %v441 = vld [vmem:[%s1] sm:$0x1]
        %443 = vset.pattern.permute.xlu0 0
        %444 = vperm.xlu0 %443, %v437
        %v445 = vpop.permute.xlu0 %444
        %448 = vset.pattern.permute.xlu0 0
        %449 = vperm.xlu0 %448, %v438
        %v450 = vpop.permute.xlu0 %449
        %453 = vset.pattern.permute.xlu0 0
        %454 = vperm.xlu0 %453, %v439
        %v455 = vpop.permute.xlu0 %454
        %458 = vset.pattern.permute.xlu0 0
        %459 = vperm.xlu0 %458, %v440
        %v460 = vpop.permute.xlu0 %459
        %v462 = vlaneseq
        %v463 = vshrl.u32 %v462, 7
        %v464 = vsub.s32 0, %v463
        %v465 = vrot.slane %v441, %v464
        %v466 = vmul.f32 %v445, %v465
        %v467 = vmul.f32 %v450, %v465
        %v468 = vmul.f32 %v455, %v465
        %v469 = vmul.f32 %v460, %v465
        %v470 = vadd.f32 %v466, 0.0
        %v471 = vadd.f32 %v467, 0.0
        %v472 = vadd.f32 %v468, 0.0
        %v473 = vadd.f32 %v469, 0.0
        %v474 = vld [vmem:[%s1 + $0x1] sm:$0x1]
        %475 = vset.pattern.permute.xlu0 1
        %476 = vperm.xlu0 %475, %v437
        %v477 = vpop.permute.xlu0 %476
        %479 = vset.pattern.permute.xlu0 1
        %480 = vperm.xlu0 %479, %v438
        %v481 = vpop.permute.xlu0 %480
        %483 = vset.pattern.permute.xlu0 1
        %484 = vperm.xlu0 %483, %v439
        %v485 = vpop.permute.xlu0 %484
        %487 = vset.pattern.permute.xlu0 1
        %488 = vperm.xlu0 %487, %v440
        %v489 = vpop.permute.xlu0 %488
        %v491 = vlaneseq
        %v492 = vshrl.u32 %v491, 7
        %v493 = vsub.s32 0, %v492
        %v494 = vrot.slane %v474, %v493
        %v495 = vmul.f32 %v477, %v494
        %v496 = vmul.f32 %v481, %v494
        %v497 = vmul.f32 %v485, %v494
        %v498 = vmul.f32 %v489, %v494
        %v499 = vadd.f32 %v470, %v495
        %v500 = vadd.f32 %v471, %v496
        %v501 = vadd.f32 %v472, %v497
        %v502 = vadd.f32 %v473, %v498
        %v503 = vld [vmem:[%s1 + $0x2] sm:$0x1]
        %504 = vset.pattern.permute.xlu0 2
        %505 = vperm.xlu0 %504, %v437
        %v506 = vpop.permute.xlu0 %505
        %508 = vset.pattern.permute.xlu0 2
        %509 = vperm.xlu0 %508, %v438
        %v510 = vpop.permute.xlu0 %509
        %512 = vset.pattern.permute.xlu0 2
        %513 = vperm.xlu0 %512, %v439
        %v514 = vpop.permute.xlu0 %513
        %516 = vset.pattern.permute.xlu0 2
        %517 = vperm.xlu0 %516, %v440
        %v518 = vpop.permute.xlu0 %517
        %v520 = vlaneseq
        %v521 = vshrl.u32 %v520, 7
        %v522 = vsub.s32 0, %v521
        %v523 = vrot.slane %v503, %v522
        %v524 = vmul.f32 %v506, %v523
        %v525 = vmul.f32 %v510, %v523
        %v526 = vmul.f32 %v514, %v523
        %v527 = vmul.f32 %v518, %v523
        %v528 = vadd.f32 %v499, %v524
        %v529 = vadd.f32 %v500, %v525
        %v530 = vadd.f32 %v501, %v526
        %v531 = vadd.f32 %v502, %v527
        %v532 = vld [vmem:[%s1 + $0x3] sm:$0x1]
        %533 = vset.pattern.permute.xlu0 3
        %534 = vperm.xlu0 %533, %v437
        %v535 = vpop.permute.xlu0 %534
        %537 = vset.pattern.permute.xlu0 3
        %538 = vperm.xlu0 %537, %v438
        %v539 = vpop.permute.xlu0 %538
        %541 = vset.pattern.permute.xlu0 3
        %542 = vperm.xlu0 %541, %v439
        %v543 = vpop.permute.xlu0 %542
        %545 = vset.pattern.permute.xlu0 3
        %546 = vperm.xlu0 %545, %v440
        %v547 = vpop.permute.xlu0 %546
        %v549 = vlaneseq
        %v550 = vshrl.u32 %v549, 7
        %v551 = vsub.s32 0, %v550
        %v552 = vrot.slane %v532, %v551
        %v553 = vmul.f32 %v535, %v552
        %v554 = vmul.f32 %v539, %v552
        %v555 = vmul.f32 %v543, %v552
        %v556 = vmul.f32 %v547, %v552
        %v557 = vadd.f32 %v528, %v553
        %v558 = vadd.f32 %v529, %v554
        %v559 = vadd.f32 %v530, %v555
        %v560 = vadd.f32 %v531, %v556
        %v561 = vld [vmem:[%s2] sm:$0x1]
        %v563 = vlaneseq
        %v564 = vshrl.u32 %v563, 7
        %v565 = vsub.s32 0, %v564
        %v566 = vrot.slane %v561, %v565
        %v568 = vadd.f32 %v557, %v566
        %v569 = vadd.f32 %v558, %v566
        %v570 = vadd.f32 %v559, %v566
        %v571 = vadd.f32 %v560, %v566
        %v572 = vmax.f32 %v568, 0.0
        %v573 = vmax.f32 %v569, 0.0
        %v574 = vmax.f32 %v570, 0.0
        %v575 = vmax.f32 %v571, 0.0
        %v576 = vpack.c.bf16 %v573, %v572
        %v577 = vpack.c.bf16 %v575, %v574
        %v578 = vld [vmem:[%s3] sm:$0xf]
        %v579 = vld [vmem:[%s3 + $0x4] sm:$0xf]
        %v580 = vld [vmem:[%s3 + $0x8] sm:$0xf]
        %v581 = vld [vmem:[%s3 + $0xc] sm:$0xf]
        %v582 = vld [vmem:[%s3 + $0x10] sm:$0xf]
        %v583 = vld [vmem:[%s3 + $0x14] sm:$0xf]
        %v584 = vld [vmem:[%s3 + $0x18] sm:$0xf]
        %v585 = vld [vmem:[%s3 + $0x1c] sm:$0xf]
        %v586 = vld [vmem:[%s3 + $0x20] sm:$0xf]
        %v587 = vld [vmem:[%s3 + $0x24] sm:$0xf]
        %v588 = vld [vmem:[%s3 + $0x28] sm:$0xf]
        %v589 = vld [vmem:[%s3 + $0x2c] sm:$0xf]
        %v590 = vld [vmem:[%s3 + $0x30] sm:$0xf]
        %v591 = vld [vmem:[%s3 + $0x34] sm:$0xf]
        %v592 = vld [vmem:[%s3 + $0x38] sm:$0xf]
        %v593 = vld [vmem:[%s3 + $0x3c] sm:$0xf]
        %v594 = vld [vmem:[%s4] sm:$0x1]
        %v596 = vlaneseq
        %v597 = vshrl.u32 %v596, 7
        %v598 = vsub.s32 0, %v597
        %v599 = vrot.slane %v594, %v598
        %v617 = vunpack.c.l.b16 %v578
        %v618 = vunpack.c.l.b16 %v579
        %v619 = vunpack.c.l.b16 %v580
        %v620 = vunpack.c.l.b16 %v581
        %v621 = vunpack.c.l.b16 %v582
        %v622 = vunpack.c.l.b16 %v583
        %v623 = vunpack.c.l.b16 %v584
        %v624 = vunpack.c.l.b16 %v585
        %v625 = vunpack.c.l.b16 %v586
        %v626 = vunpack.c.l.b16 %v587
        %v627 = vunpack.c.l.b16 %v588
        %v628 = vunpack.c.l.b16 %v589
        %v629 = vunpack.c.l.b16 %v590
        %v630 = vunpack.c.l.b16 %v591
        %v631 = vunpack.c.l.b16 %v592
        %v632 = vunpack.c.l.b16 %v593
        %v633 = vpack.c.b16 %v618, %v617
        %v634 = vpack.c.b16 %v620, %v619
        %v635 = vpack.c.b16 %v622, %v621
        %v636 = vpack.c.b16 %v624, %v623
        %v637 = vpack.c.b16 %v626, %v625
        %v638 = vpack.c.b16 %v628, %v627
        %v639 = vpack.c.b16 %v630, %v629
        %v640 = vpack.c.b16 %v632, %v631
        %649 = vmatprep.subr.bf16.mxu0 0
        %650 = vmatpush1.bf16.msra.mxu0 %v633
        %651 = vmatprep.subr.bf16.mxu0 0
        %652 = vmatpush1.bf16.msra.mxu0 %v634
        %653 = vmatprep.subr.bf16.mxu0 0
        %654 = vmatpush1.bf16.msra.mxu0 %v635
        %655 = vmatprep.subr.bf16.mxu0 0
        %656 = vmatpush1.bf16.msra.mxu0 %v636
        %657 = vmatprep.subr.bf16.mxu0 0
        %658 = vmatpush1.bf16.msra.mxu0 %v637
        %659 = vmatprep.subr.bf16.mxu0 0
        %660 = vmatpush1.bf16.msra.mxu0 %v638
        %661 = vmatprep.subr.bf16.mxu0 0
        %662 = vmatpush1.bf16.msra.mxu0 %v639
        %663 = vmatprep.subr.bf16.mxu0 0
        %664 = vmatpush1.bf16.msra.mxu0 %v640
        %665 = vmatprep.subr.bf16.mxu0 0
        %666 = vmatpush1.bf16.msra.mxu0 0
        %667 = vmatprep.subr.bf16.mxu0 0
        %668 = vmatpush1.bf16.msra.mxu0 0
        %669 = vmatprep.subr.bf16.mxu0 0
        %670 = vmatpush1.bf16.msra.mxu0 0
        %671 = vmatprep.subr.bf16.mxu0 0
        %672 = vmatpush1.bf16.msra.mxu0 0
        %673 = vmatprep.subr.bf16.mxu0 0
        %674 = vmatpush1.bf16.msra.mxu0 0
        %675 = vmatprep.subr.bf16.mxu0 0
        %676 = vmatpush1.bf16.msra.mxu0 0
        %677 = vmatprep.subr.bf16.mxu0 0
        %678 = vmatpush1.bf16.msra.mxu0 0
        %679 = vmatprep.subr.bf16.mxu0 0
        %680 = vmatpush1.bf16.msra.mxu0 0
        %681 = vmatprep.mubr.bf16.mxu0 0
        %682 = vmatmul.mubr.bf16.gmra.mrb[0].mxu0 %v576
        %v683 = vpop.f32.mrb[0].mxu0
        %v684 = vadd.f32 %v599, %v683
        %v685 = vpop.f32.mrb[0].mxu0
        %v686 = vpop.f32.mrb[0].mxu0
        %v687 = vadd.f32 %v599, %v686
        %v688 = vpop.f32.mrb[0].mxu0
        %689 = vmatprep.mubr.bf16.mxu0 0
        %690 = vmatmul.mubr.bf16.gmra.mrb[0].mxu0 %v577
        %v691 = vpop.f32.mrb[0].mxu0
        %v692 = vadd.f32 %v599, %v691
        %v693 = vpop.f32.mrb[0].mxu0
        %v694 = vpop.f32.mrb[0].mxu0
        %v695 = vadd.f32 %v599, %v694
        %v696 = vpop.f32.mrb[0].mxu0
        %697 = vdwg.mxu0
        %v698 = vmax.f32 %v684, 0.0
        %v699 = vmax.f32 %v687, 0.0
        %v700 = vmax.f32 %v692, 0.0
        %v701 = vmax.f32 %v695, 0.0
        %s702 = smul.u32 %s28, 16
        %v703 = vlaneseq
        %v704 = vshrl.u32 %v703, 7
        %v705 = vadd.s32 %v704, 8
        %v706 = vstv %s702
        %v707 = vadd.s32 %v706, %v704
        %v708 = vadd.s32 %v706, %v705
        %vm709 = vcmp.lt.s32.totalorder %v707, 56
        %vm710 = vcmp.lt.s32.totalorder %v708, 56
        %v711 = vsel %vm709, %v698, 0.0
        %v712 = vsel %vm710, %v699, 0.0
        %v713 = vsel %vm709, %v700, 0.0
        %v714 = vsel %vm710, %v701, 0.0
        %v715 = vld [vmem:[#allocation2] sm:$0x3]
        %v716 = vmax.f32 %v711, %v712
        %v717 = vrot.slane %v716, 4
        %v718 = vmax.f32 %v716, %v717
        %v719 = vrot.slane %v718, 2
        %v720 = vmax.f32 %v718, %v719
        %v721 = vrot.slane %v720, 1
        %v722 = vmax.f32 %v720, %v721
        %v723 = vmax.f32 %v713, %v714
        %v724 = vrot.slane %v723, 4
        %v725 = vmax.f32 %v723, %v724
        %v726 = vrot.slane %v725, 2
        %v727 = vmax.f32 %v725, %v726
        %v728 = vrot.slane %v727, 1
        %v729 = vmax.f32 %v727, %v728
        %vm732 = vcmask 1041409
        %v733 = vsel %vm732, %v729, %v722
        %v735 = vmax.f32 %v715, %v733
        %736 = vst [vmem:[#allocation2] sm:$0x3] %v735
        %p737 = scmp.eq.s32.totalorder %s28, 3
        // Predicated region
        $region110: #{tpu_custom_call.1} parent=92 // pred_check
          %p738 = pneg %p737
        $region111: #{tpu_custom_call.1} parent=92 // pred_check_branch
          %740 = sbr.rel (%p738) target = $region113
        $region112: #{tpu_custom_call.1} parent=92 // pred_region
          %v741 = vld [vmem:[#allocation2] sm:$0x3]
          %v742 = vld [vmem:[#allocation4] sm:$0xff]
          %v743 = vld [vmem:[#allocation4 + $0x8] sm:$0xff]
          %v744 = vld [vmem:[#allocation4 + $0x10] sm:$0xff]
          %v745 = vld [vmem:[#allocation4 + $0x18] sm:$0xff]
          %v746 = vld [vmem:[#allocation4 + $0x20] sm:$0xff]
          %v747 = vld [vmem:[#allocation4 + $0x28] sm:$0xff]
          %v748 = vld [vmem:[#allocation4 + $0x30] sm:$0xff]
          %v749 = vld [vmem:[#allocation4 + $0x38] sm:$0xff]
          %v750 = vld [vmem:[#allocation4 + $0x40] sm:$0xff]
          %v751 = vld [vmem:[#allocation4 + $0x48] sm:$0xff]
          %v752 = vld [vmem:[#allocation4 + $0x50] sm:$0xff]
          %v753 = vld [vmem:[#allocation4 + $0x58] sm:$0xff]
          %v754 = vld [vmem:[#allocation4 + $0x60] sm:$0xff]
          %v755 = vld [vmem:[#allocation4 + $0x68] sm:$0xff]
          %v756 = vld [vmem:[#allocation4 + $0x70] sm:$0xff]
          %v757 = vld [vmem:[#allocation4 + $0x78] sm:$0xff]
          %v758 = vld [vmem:[%s6] sm:$0x1]
          %v760 = vlaneseq
          %v761 = vshrl.u32 %v760, 7
          %v762 = vsub.s32 0, %v761
          %v763 = vrot.slane %v758, %v762
          %765 = vmatprep.subr.mxu0 0.0
          %766 = vmatpush1.msra.mxu0 %v742
          %767 = vmatprep.subr.mxu0 0.0
          %768 = vmatpush1.msra.mxu0 %v743
          %769 = vmatprep.subr.mxu0 0.0
          %770 = vmatpush1.msra.mxu0 %v744
          %771 = vmatprep.subr.mxu0 0.0
          %772 = vmatpush1.msra.mxu0 %v745
          %773 = vmatprep.subr.mxu0 0.0
          %774 = vmatpush1.msra.mxu0 %v746
          %775 = vmatprep.subr.mxu0 0.0
          %776 = vmatpush1.msra.mxu0 %v747
          %777 = vmatprep.subr.mxu0 0.0
          %778 = vmatpush1.msra.mxu0 %v748
          %779 = vmatprep.subr.mxu0 0.0
          %780 = vmatpush1.msra.mxu0 %v749
          %781 = vmatprep.subr.mxu0 0.0
          %782 = vmatpush1.msra.mxu0 %v750
          %783 = vmatprep.subr.mxu0 0.0
          %784 = vmatpush1.msra.mxu0 %v751
          %785 = vmatprep.subr.mxu0 0.0
          %786 = vmatpush1.msra.mxu0 %v752
          %787 = vmatprep.subr.mxu0 0.0
          %788 = vmatpush1.msra.mxu0 %v753
          %789 = vmatprep.subr.mxu0 0.0
          %790 = vmatpush1.msra.mxu0 %v754
          %791 = vmatprep.subr.mxu0 0.0
          %792 = vmatpush1.msra.mxu0 %v755
          %793 = vmatprep.subr.mxu0 0.0
          %794 = vmatpush1.msra.mxu0 %v756
          %795 = vmatprep.subr.mxu0 0.0
          %796 = vmatpush1.msra.mxu0 %v757
          %797 = vmatprep.subr.mxu0 0.0
          %798 = vmatpush1.msra.mxu0 0.0
          %799 = vmatprep.subr.mxu0 0.0
          %800 = vmatpush1.msra.mxu0 0.0
          %801 = vmatprep.subr.mxu0 0.0
          %802 = vmatpush1.msra.mxu0 0.0
          %803 = vmatprep.subr.mxu0 0.0
          %804 = vmatpush1.msra.mxu0 0.0
          %805 = vmatprep.subr.mxu0 0.0
          %806 = vmatpush1.msra.mxu0 0.0
          %807 = vmatprep.subr.mxu0 0.0
          %808 = vmatpush1.msra.mxu0 0.0
          %809 = vmatprep.subr.mxu0 0.0
          %810 = vmatpush1.msra.mxu0 0.0
          %811 = vmatprep.subr.mxu0 0.0
          %812 = vmatpush1.msra.mxu0 0.0
          %813 = vmatprep.subr.mxu0 0.0
          %814 = vmatpush1.msra.mxu0 0.0
          %815 = vmatprep.subr.mxu0 0.0
          %816 = vmatpush1.msra.mxu0 0.0
          %817 = vmatprep.subr.mxu0 0.0
          %818 = vmatpush1.msra.mxu0 0.0
          %819 = vmatprep.subr.mxu0 0.0
          %820 = vmatpush1.msra.mxu0 0.0
          %821 = vmatprep.subr.mxu0 0.0
          %822 = vmatpush1.msra.mxu0 0.0
          %823 = vmatprep.subr.mxu0 0.0
          %824 = vmatpush1.msra.mxu0 0.0
          %825 = vmatprep.subr.mxu0 0.0
          %826 = vmatpush1.msra.mxu0 0.0
          %827 = vmatprep.subr.mxu0 0.0
          %828 = vmatpush1.msra.mxu0 0.0
          %829 = vmatprep.mubr.f32.mxu0 0.0
          %830 = vmatmul.mubr.f32.gmra.mrb[0].mxu0 %v741
          %v831 = vpop.f32.mrb[0].mxu0
          %v832 = vadd.f32 %v763, %v831
          %v833 = vpop.f32.mrb[0].mxu0
          %834 = vdwg.mxu0
          %v835 = vmax.f32 %v832, 0.0
          %v836 = vld [vmem:[#allocation7] sm:$0xff]
          %v837 = vld [vmem:[#allocation7 + $0x8] sm:$0xff]
          %v838 = vld [vmem:[#allocation7 + $0x10] sm:$0xff]
          %v839 = vld [vmem:[#allocation7 + $0x18] sm:$0xff]
          %v840 = vld [vmem:[#allocation7 + $0x20] sm:$0xff]
          %v841 = vld [vmem:[#allocation7 + $0x28] sm:$0xff]
          %v842 = vld [vmem:[#allocation7 + $0x30] sm:$0xff]
          %v843 = vld [vmem:[#allocation7 + $0x38] sm:$0xff]
          %v844 = vld [vmem:[#allocation7 + $0x40] sm:$0xff]
          %v845 = vld [vmem:[#allocation7 + $0x48] sm:$0xff]
          %v846 = vld [vmem:[#allocation7 + $0x50] sm:$0xff]
          %v847 = vld [vmem:[#allocation7 + $0x58] sm:$0xff]
          %v848 = vld [vmem:[#allocation7 + $0x60] sm:$0xff]
          %v849 = vld [vmem:[#allocation7 + $0x68] sm:$0xff]
          %v850 = vld [vmem:[#allocation7 + $0x70] sm:$0xff]
          %v851 = vld [vmem:[#allocation7 + $0x78] sm:$0xff]
          %v852 = vld [vmem:[%s8] sm:$0x1]
          %v854 = vlaneseq
          %v855 = vshrl.u32 %v854, 7
          %v856 = vsub.s32 0, %v855
          %v857 = vrot.slane %v852, %v856
          %859 = vmatprep.subr.mxu0 0.0
          %860 = vmatpush1.msra.mxu0 %v836
          %861 = vmatprep.subr.mxu0 0.0
          %862 = vmatpush1.msra.mxu0 %v837
          %863 = vmatprep.subr.mxu0 0.0
          %864 = vmatpush1.msra.mxu0 %v838
          %865 = vmatprep.subr.mxu0 0.0
          %866 = vmatpush1.msra.mxu0 %v839
          %867 = vmatprep.subr.mxu0 0.0
          %868 = vmatpush1.msra.mxu0 %v840
          %869 = vmatprep.subr.mxu0 0.0
          %870 = vmatpush1.msra.mxu0 %v841
          %871 = vmatprep.subr.mxu0 0.0
          %872 = vmatpush1.msra.mxu0 %v842
          %873 = vmatprep.subr.mxu0 0.0
          %874 = vmatpush1.msra.mxu0 %v843
          %875 = vmatprep.subr.mxu0 0.0
          %876 = vmatpush1.msra.mxu0 %v844
          %877 = vmatprep.subr.mxu0 0.0
          %878 = vmatpush1.msra.mxu0 %v845
          %879 = vmatprep.subr.mxu0 0.0
          %880 = vmatpush1.msra.mxu0 %v846
          %881 = vmatprep.subr.mxu0 0.0
          %882 = vmatpush1.msra.mxu0 %v847
          %883 = vmatprep.subr.mxu0 0.0
          %884 = vmatpush1.msra.mxu0 %v848
          %885 = vmatprep.subr.mxu0 0.0
          %886 = vmatpush1.msra.mxu0 %v849
          %887 = vmatprep.subr.mxu0 0.0
          %888 = vmatpush1.msra.mxu0 %v850
          %889 = vmatprep.subr.mxu0 0.0
          %890 = vmatpush1.msra.mxu0 %v851
          %891 = vmatprep.subr.mxu0 0.0
          %892 = vmatpush1.msra.mxu0 0.0
          %893 = vmatprep.subr.mxu0 0.0
          %894 = vmatpush1.msra.mxu0 0.0
          %895 = vmatprep.subr.mxu0 0.0
          %896 = vmatpush1.msra.mxu0 0.0
          %897 = vmatprep.subr.mxu0 0.0
          %898 = vmatpush1.msra.mxu0 0.0
          %899 = vmatprep.subr.mxu0 0.0
          %900 = vmatpush1.msra.mxu0 0.0
          %901 = vmatprep.subr.mxu0 0.0
          %902 = vmatpush1.msra.mxu0 0.0
          %903 = vmatprep.subr.mxu0 0.0
          %904 = vmatpush1.msra.mxu0 0.0
          %905 = vmatprep.subr.mxu0 0.0
          %906 = vmatpush1.msra.mxu0 0.0
          %907 = vmatprep.subr.mxu0 0.0
          %908 = vmatpush1.msra.mxu0 0.0
          %909 = vmatprep.subr.mxu0 0.0
          %910 = vmatpush1.msra.mxu0 0.0
          %911 = vmatprep.subr.mxu0 0.0
          %912 = vmatpush1.msra.mxu0 0.0
          %913 = vmatprep.subr.mxu0 0.0
          %914 = vmatpush1.msra.mxu0 0.0
          %915 = vmatprep.subr.mxu0 0.0
          %916 = vmatpush1.msra.mxu0 0.0
          %917 = vmatprep.subr.mxu0 0.0
          %918 = vmatpush1.msra.mxu0 0.0
          %919 = vmatprep.subr.mxu0 0.0
          %920 = vmatpush1.msra.mxu0 0.0
          %921 = vmatprep.subr.mxu0 0.0
          %922 = vmatpush1.msra.mxu0 0.0
          %923 = vmatprep.mubr.f32.mxu0 0.0
          %924 = vmatmul.mubr.f32.gmra.mrb[0].mxu0 %v835
          %v925 = vpop.f32.mrb[0].mxu0
          %v926 = vadd.f32 %v857, %v925
          %v927 = vpop.f32.mrb[0].mxu0
          %928 = vdwg.mxu0
          %929 = vst [vmem:[#allocation9] sm:$0x3] %v926
        $region113: #{tpu_custom_call.1} parent=92 // pred_fallthru
          _
        // Predicated region
        $region114: #{tpu_custom_call.1} parent=92 // pred_check
          %p930 = pneg %p249
        $region115: #{tpu_custom_call.1} parent=92 // pred_check_branch
          %932 = sbr.rel (%p930) target = $region117
        $region116: #{tpu_custom_call.1} parent=92 // pred_region
          %s934 = ssub.s32 32, 32
          %935 = vsyncadd [#allocation6], %s934
          %s936 = smul.addr %s27, 32
          %s937 = scalar_lea.hbm %s9, %s936
          %s939 = sshll.u32 [#allocation9], 4
          %s940 = int_to_ptr.vmem [resolvable:$true] %s939
          %942 = dma.vmem_to_hbm [thread:$0]  %s940, 32, %s937, [#allocation6]
        $region117: #{tpu_custom_call.1} parent=92 // pred_fallthru
          _
        // Predicated region
        $region118: #{tpu_custom_call.1} parent=92 // pred_check
          %p943 = pneg %p249
        $region119: #{tpu_custom_call.1} parent=92 // pred_check_branch
          %945 = sbr.rel (%p943) target = $region121
        $region120: #{tpu_custom_call.1} parent=92 // pred_region
          %946 = dma.done [#allocation6], 32
        $region121: #{tpu_custom_call.1} parent=92 // pred_fallthru
          _
      $region93: #{tpu_custom_call.1} parent=5 // pred_fallthru
        _
      %p947 = scmp.le.s32.totalorder 2, %s18
      // Predicated region
      $region122: #{tpu_custom_call.1} parent=5 // pred_check
        %p948 = pneg %p947
      $region123: #{tpu_custom_call.1} parent=5 // pred_check_branch
        %950 = sbr.rel (%p948) target = $region125
      $region124: #{tpu_custom_call.1} parent=5 // pred_region
        %s951 = ssub.s32 %s18, 2
      $region125: #{tpu_custom_call.1} parent=5 // pred_fallthru
        _
    $region6: #{tpu_custom_call.1} parent=1 // loop_footer
      %s22 = sadd.s32 1, %s18
    $region7: #{tpu_custom_call.1} parent=1 // loop_footer_branch
      %17 = sbr.rel target = $region3
    $region8: #{tpu_custom_call.1} parent=1 // loop_exit
      _
    %952 = vsyncpa [#allocation5], 1
    %s953 = scalar_lea.sflag [#allocation5], 1
    %954 = vsyncpa %s953, 1
    %955 = vsyncpa [#allocation8], 1
    %956 = vsyncpa [#allocation6], 1
    %s957 = scalar_lea.sflag [#allocation6], 1
    %958 = vsyncpa %s957, 1

</llo_original>
